<compile_context>
chip_gen: v7x
topology: tpu7x:2x2x1
jax: 0.10.0
libtpu: 0.0.40
codegen_flags: <defaults>
</compile_context>

<pallas_src>
import functools

import jax
import jax.numpy as jnp
from jax.experimental import pallas as pl
from jax.experimental.pallas import tpu as pltpu


# ----------------------------- Pallas kernel -------------------------------


def _ensemble_kernel(x_ref, node_ref, wn_ref, b_ref, wx_ref, out_ref, *,
                     num_models, c_in):
    """Fused ensemble forward over one (Bt, Wt) tile, NCW layout.

    x_ref   : (Bt, C_in, Wt) f32 VMEM -- sequence input tile (W on lanes)
    node_ref: (M, Bt, H)     f32 VMEM -- per-model node representations
    wn_ref  : (M, H, 2)      f32 VMEM -- node-rep weights, relative to chan 2
    b_ref   : (M, 1, 2)      f32 VMEM -- per-model biases, relative to chan 2
    wx_ref  : (M*C_in*2,)    f32 SMEM -- sequence weights (scalars), relative
    out_ref : (Bt, 3, Wt)    f32 VMEM -- ensemble-mean of per-model softmax
    """
    # Hoist the x channel slabs out of the model loop: each (Bt, Wt) slab is
    # loaded once and reused across all M models (cuts vld traffic ~Mx).
    x_slabs = [x_ref[:, c, :] for c in range(c_in)]          # c_in x (Bt, Wt)

    # Node contribution (already relative to channel 2) + bias for all models
    # at once: (M, Bt, 2).  Tiny contraction over H; recomputed per W tile
    # but negligible next to the (Bt, Wt)-sized slab math.
    nb_all = jnp.einsum(
        "mbh,mhd->mbd", node_ref[...], wn_ref[...],
        preferred_element_type=jnp.float32) + b_ref[...]

    acc0 = jnp.zeros_like(x_slabs[0])
    acc1 = jnp.zeros_like(x_slabs[0])
    acc2 = jnp.zeros_like(x_slabs[0])

    # M is small & static: fully unrolled.
    for m in range(num_models):
        # Relative logits d0 = l0 - l2, d1 = l1 - l2 (channel 2 logit == 0).
        # 1x1 conv as unrolled VPU broadcast-FMAs on dense (Bt, Wt) slabs;
        # per-channel weights are scalar reads from SMEM (no MXU).
        rel = []
        for d in range(2):
            l = x_slabs[0] * wx_ref[(m * c_in + 0) * 2 + d]
            for c in range(1, c_in):
                l = l + x_slabs[c] * wx_ref[(m * c_in + c) * 2 + d]
            # node part + bias already folded to a single (Bt, 1) row.
            rel.append(l + nb_all[m, :, d:d + 1])
        d0, d1 = rel

        # Unrolled 3-way channel softmax over (d0, d1, 0):
        # pure VPU + EUP, no XLU reductions.  Identical to softmax(l0,l1,l2).
        mx = jnp.maximum(jnp.maximum(d0, d1), 0.0)
        e0 = jnp.exp(d0 - mx)
        e1 = jnp.exp(d1 - mx)
        e2 = jnp.exp(-mx)                      # exp(0 - mx): reference channel
        inv = pl.reciprocal(e0 + e1 + e2, approx=True)
        acc0 = acc0 + e0 * inv
        acc1 = acc1 + e1 * inv
        acc2 = acc2 + e2 * inv

    scale = 1.0 / num_models
    # Lane-dense stores: each write is a full-Wt-wide (Bt, Wt) slab into one
    # sublane row of the (3, Wt) output tile.
    out_ref[:, 0, :] = acc0 * scale
    out_ref[:, 1, :] = acc1 * scale
    out_ref[:, 2, :] = acc2 * scale


# ------------------------------- wrapper ------------------------------------


def _choose_tiles(B, W, C_in, M, H, budget_bytes=16 * 1024 * 1024):
    """Pick (Bt, Wt): as large as possible within a double-buffered VMEM budget.

    Bt must be a multiple of 8 or full B (it is the second-to-last dim of the
    node block); Wt a multiple of 128 or full W.
    """
    bt_cands = [b for b in (32, 16, 8) if B % b == 0] or [B]
    wt_cands = [w for w in (4096, 2048, 1024, 512, 256, 128) if W % w == 0] or [W]
    for bt in bt_cands:
        for wt in wt_cands:
            vmem = 8 * (bt * C_in * wt      # x tile (x2 double buffer, f32)
                        + bt * 3 * wt       # out tile
                        + M * bt * H        # node tile
                        + M * H * 2         # wn
                        + M * 2)            # bias
            if vmem <= budget_bytes:
                return bt, wt
    return bt_cands[-1], wt_cands[-1]


def full_model_ensemble(x_ncw, node_reps, wx, wn, b):
    """Ensemble forward.

    x_ncw    : (B, C_in, W)   -- PyTorch NCW convention (kept as-is)
    node_reps: (M, B, H)
    wx       : (M, C_in, 3)   -- 1x1-conv weights on sequence channels
    wn       : (M, H, 3)      -- 1x1-conv weights on node_rep channels
    b        : (M, 3)         -- per-model bias
    returns  : (B, 3, W)      -- same as the PyTorch module
    """
    M, B, H = node_reps.shape
    _, C_in, W = x_ncw.shape

    x_f32 = x_ncw.astype(jnp.float32)
    node_f32 = node_reps.astype(jnp.float32)
    wx_f32 = wx.astype(jnp.float32)
    wn_f32 = wn.astype(jnp.float32)
    b_f32 = b.astype(jnp.float32)

    # Channel softmax is shift-invariant: fold output-channel 2 into channels
    # 0/1 by differencing the (tiny) parameters on the host side.  The kernel
    # then only materialises 2 logit slabs per model.
    wx_rel = wx_f32[:, :, :2] - wx_f32[:, :, 2:3]               # (M, C_in, 2)
    wn_rel = wn_f32[:, :, :2] - wn_f32[:, :, 2:3]               # (M, H, 2)
    b_rel = (b_f32[:, :2] - b_f32[:, 2:3]).reshape(M, 1, 2)     # (M, 1, 2)

    # Scalar sequence weights flattened for SMEM (avoids 2-D SMEM padding).
    wx_flat = wx_rel.reshape(M * C_in * 2)

    Bt, Wt = _choose_tiles(B, W, C_in, M, H)
    grid = (B // Bt, W // Wt)

    kernel = functools.partial(_ensemble_kernel, num_models=M, c_in=C_in)

    out = pl.pallas_call(
        kernel,
        out_shape=jax.ShapeDtypeStruct((B, 3, W), jnp.float32),
        grid_spec=pltpu.PrefetchScalarGridSpec(
            num_scalar_prefetch=0,
            grid=grid,
            in_specs=[
                # sequence input tile (W on lanes)
                pl.BlockSpec((Bt, C_in, Wt), lambda i, j: (i, 0, j)),
                # node reps: tiled over batch, full M/H (re-fetch skipped when
                # the block index is unchanged across W steps)
                pl.BlockSpec((M, Bt, H), lambda i, j: (0, i, 0)),
                # relative node weights: whole array each step (tiny)
                pl.BlockSpec((M, H, 2), lambda i, j: (0, 0, 0)),
                # relative biases: whole array each step (tiny)
                pl.BlockSpec((M, 1, 2), lambda i, j: (0, 0, 0)),
                # scalar sequence weights live in SMEM
                pl.BlockSpec(memory_space=pltpu.MemorySpace.SMEM),
            ],
            out_specs=pl.BlockSpec((Bt, 3, Wt), lambda i, j: (i, 0, j)),
        ),
        compiler_params=pltpu.CompilerParams(
            dimension_semantics=("parallel", "parallel"),
            vmem_limit_bytes=32 * 1024 * 1024,
        ),
    )(x_f32, node_f32, wn_rel, b_rel, wx_flat)

    return out


# ------------------------------ reference ----------------------------------


def full_model_ensemble_ref(x_ncw, node_reps, wx, wn, b):
    M = node_reps.shape[0]
    outs = []
    for m in range(M):
        seq_part = jnp.einsum("bcw,cd->bdw", x_ncw, wx[m])
        node_part = jnp.einsum("bh,hd->bd", node_reps[m], wn[m])
        logits = seq_part + node_part[:, :, None] + b[m][None, :, None]
        outs.append(jax.nn.softmax(logits, axis=1))
    return jnp.mean(jnp.stack(outs, axis=0), axis=0)


# -------------------------------- main --------------------------------------


if __name__ == "__main__":
    # Small deterministic shapes consistent with the module's forward:
    #   input:     (B, C_in, window_size)
    #   node_reps: one (B, H) per model, M models
    M = 3          # number of full models in the ensemble
    B = 2          # batch
    C_in = 4       # sequence-input channels
    H = 32         # node-representation hidden size
    W = 16         # window_size

    key = jax.random.PRNGKey(0)
    k_x, k_n, k_wx, k_wn, k_b = jax.random.split(key, 5)

    x = jax.random.normal(k_x, (B, C_in, W), dtype=jnp.float32)
    node_reps = jax.random.normal(k_n, (M, B, H), dtype=jnp.float32)

    # Deterministic synthetic parameters for the M per-model 1x1 convs.
    wx = 0.1 * jax.random.normal(k_wx, (M, C_in, 3), dtype=jnp.float32)
    wn = 0.1 * jax.random.normal(k_wn, (M, H, 3), dtype=jnp.float32)
    b = 0.01 * jax.random.normal(k_b, (M, 3), dtype=jnp.float32)

    out = jax.block_until_ready(full_model_ensemble(x, node_reps, wx, wn, b))
    ref = full_model_ensemble_ref(x, node_reps, wx, wn, b)

    assert out.shape == (B, 3, W), out.shape
    # Tolerance reflects the EUP approximate reciprocal (~2^-12 relative
    # error) used for the softmax denominator; outputs are probabilities.
    assert jnp.allclose(out, ref, rtol=2e-3, atol=2e-3), "mismatch vs. JAX reference"

    print("KERNEL_OK")
</pallas_src>

<mosaic_0001>
module attributes {stable_mosaic.version = 11 : i64} {
  func.func @_ensemble_kernel(%arg0: i32, %arg1: i32, %arg2: memref<2x4x16xf32, #tpu.memory_space<vmem>>, %arg3: memref<3x2x32xf32, #tpu.memory_space<vmem>>, %arg4: memref<3x32x2xf32, #tpu.memory_space<vmem>>, %arg5: memref<3x1x2xf32, #tpu.memory_space<vmem>>, %arg6: memref<24xf32, #tpu.memory_space<smem>>, %arg7: memref<2x3x16xf32, #tpu.memory_space<vmem>>) attributes {dimension_semantics = [#tpu.dimension_semantics<parallel>, #tpu.dimension_semantics<parallel>], iteration_bounds = array<i64: 1, 1>, scalar_prefetch = 0 : i64, scratch_operands = 0 : i64, tpu.core_type = #tpu.core_type<tc>, window_params = [{transform_indices = @transform_0, window_bounds = array<i64: 2, 4, 16>}, {transform_indices = @transform_1, window_bounds = array<i64: 3, 2, 32>}, {pipeline_mode = #tpu.pipeline_mode<synchronous>, transform_indices = @transform_2, window_bounds = array<i64: 3, 32, 2>}, {pipeline_mode = #tpu.pipeline_mode<synchronous>, transform_indices = @transform_3, window_bounds = array<i64: 3, 1, 2>}, {transform_indices = @transform_4, window_bounds = array<i64: 24>}, {transform_indices = @transform_5, window_bounds = array<i64: 2, 3, 16>}]} {
    %c0 = arith.constant 0 : index
    %c0_0 = arith.constant 0 : index
    %c0_1 = arith.constant 0 : index
    %0 = vector.load %arg2[%c0, %c0_0, %c0_1] : memref<2x4x16xf32, #tpu.memory_space<vmem>>, vector<2x1x16xf32>
    %1 = vector.shape_cast %0 : vector<2x1x16xf32> to vector<2x16xf32>
    %c0_2 = arith.constant 0 : index
    %c1 = arith.constant 1 : index
    %c0_3 = arith.constant 0 : index
    %2 = vector.load %arg2[%c0_2, %c1, %c0_3] : memref<2x4x16xf32, #tpu.memory_space<vmem>>, vector<2x1x16xf32>
    %3 = vector.shape_cast %2 : vector<2x1x16xf32> to vector<2x16xf32>
    %c0_4 = arith.constant 0 : index
    %c2 = arith.constant 2 : index
    %c0_5 = arith.constant 0 : index
    %4 = vector.load %arg2[%c0_4, %c2, %c0_5] : memref<2x4x16xf32, #tpu.memory_space<vmem>>, vector<2x1x16xf32>
    %5 = vector.shape_cast %4 : vector<2x1x16xf32> to vector<2x16xf32>
    %c0_6 = arith.constant 0 : index
    %c3 = arith.constant 3 : index
    %c0_7 = arith.constant 0 : index
    %6 = vector.load %arg2[%c0_6, %c3, %c0_7] : memref<2x4x16xf32, #tpu.memory_space<vmem>>, vector<2x1x16xf32>
    %7 = vector.shape_cast %6 : vector<2x1x16xf32> to vector<2x16xf32>
    %c0_8 = arith.constant 0 : index
    %c0_9 = arith.constant 0 : index
    %c0_10 = arith.constant 0 : index
    %8 = vector.load %arg3[%c0_8, %c0_9, %c0_10] : memref<3x2x32xf32, #tpu.memory_space<vmem>>, vector<3x2x32xf32>
    %c0_11 = arith.constant 0 : index
    %c0_12 = arith.constant 0 : index
    %c0_13 = arith.constant 0 : index
    %9 = vector.load %arg4[%c0_11, %c0_12, %c0_13] : memref<3x32x2xf32, #tpu.memory_space<vmem>>, vector<3x32x2xf32>
    "tpu.trace_start"() <{level = 10 : i32, message = "mbh,mhd->mbd"}> : () -> ()
    %cst = arith.constant dense<0.000000e+00> : vector<3x2x2xf32>
    %10 = tpu.matmul %8, %9, %cst {dimension_numbers = #tpu.dot_dimension_numbers<[2], [1], [1], [2], [0, 0, 0, 1, 1, 2], [0], [0]>} : vector<3x2x32xf32>, vector<3x32x2xf32>, vector<3x2x2xf32> -> vector<3x2x2xf32>
    "tpu.trace_stop"() : () -> ()
    %c0_14 = arith.constant 0 : index
    %c0_15 = arith.constant 0 : index
    %c0_16 = arith.constant 0 : index
    %11 = vector.load %arg5[%c0_14, %c0_15, %c0_16] : memref<3x1x2xf32, #tpu.memory_space<vmem>>, vector<3x1x2xf32>
    %12 = vector.broadcast %11 : vector<3x1x2xf32> to vector<3x2x2xf32>
    %13 = arith.addf %10, %12 : vector<3x2x2xf32>
    %cst_17 = arith.constant 0.000000e+00 : f32
    %14 = vector.broadcast %cst_17 : f32 to vector<2x16xf32>
    %cst_18 = arith.constant 0.000000e+00 : f32
    %15 = vector.broadcast %cst_18 : f32 to vector<2x16xf32>
    %cst_19 = arith.constant 0.000000e+00 : f32
    %16 = vector.broadcast %cst_19 : f32 to vector<2x16xf32>
    %c0_20 = arith.constant 0 : index
    %17 = memref.load %arg6[%c0_20] : memref<24xf32, #tpu.memory_space<smem>>
    %18 = vector.broadcast %17 : f32 to vector<2x16xf32>
    %19 = arith.mulf %1, %18 : vector<2x16xf32>
    %c2_21 = arith.constant 2 : index
    %20 = memref.load %arg6[%c2_21] : memref<24xf32, #tpu.memory_space<smem>>
    %21 = vector.broadcast %20 : f32 to vector<2x16xf32>
    %22 = arith.mulf %3, %21 : vector<2x16xf32>
    %23 = arith.addf %19, %22 : vector<2x16xf32>
    %c4 = arith.constant 4 : index
    %24 = memref.load %arg6[%c4] : memref<24xf32, #tpu.memory_space<smem>>
    %25 = vector.broadcast %24 : f32 to vector<2x16xf32>
    %26 = arith.mulf %5, %25 : vector<2x16xf32>
    %27 = arith.addf %23, %26 : vector<2x16xf32>
    %c6 = arith.constant 6 : index
    %28 = memref.load %arg6[%c6] : memref<24xf32, #tpu.memory_space<smem>>
    %29 = vector.broadcast %28 : f32 to vector<2x16xf32>
    %30 = arith.mulf %7, %29 : vector<2x16xf32>
    %31 = arith.addf %27, %30 : vector<2x16xf32>
    %32 = vector.extract_strided_slice %13 {offsets = [0, 0, 0], sizes = [1, 2, 1], strides = [1, 1, 1]} : vector<3x2x2xf32> to vector<1x2x1xf32>
    %33 = vector.shape_cast %32 : vector<1x2x1xf32> to vector<2x1xf32>
    %34 = vector.broadcast %33 : vector<2x1xf32> to vector<2x16xf32>
    %35 = arith.addf %31, %34 : vector<2x16xf32>
    %c1_22 = arith.constant 1 : index
    %36 = memref.load %arg6[%c1_22] : memref<24xf32, #tpu.memory_space<smem>>
    %37 = vector.broadcast %36 : f32 to vector<2x16xf32>
    %38 = arith.mulf %1, %37 : vector<2x16xf32>
    %c3_23 = arith.constant 3 : index
    %39 = memref.load %arg6[%c3_23] : memref<24xf32, #tpu.memory_space<smem>>
    %40 = vector.broadcast %39 : f32 to vector<2x16xf32>
    %41 = arith.mulf %3, %40 : vector<2x16xf32>
    %42 = arith.addf %38, %41 : vector<2x16xf32>
    %c5 = arith.constant 5 : index
    %43 = memref.load %arg6[%c5] : memref<24xf32, #tpu.memory_space<smem>>
    %44 = vector.broadcast %43 : f32 to vector<2x16xf32>
    %45 = arith.mulf %5, %44 : vector<2x16xf32>
    %46 = arith.addf %42, %45 : vector<2x16xf32>
    %c7 = arith.constant 7 : index
    %47 = memref.load %arg6[%c7] : memref<24xf32, #tpu.memory_space<smem>>
    %48 = vector.broadcast %47 : f32 to vector<2x16xf32>
    %49 = arith.mulf %7, %48 : vector<2x16xf32>
    %50 = arith.addf %46, %49 : vector<2x16xf32>
    %51 = vector.extract_strided_slice %13 {offsets = [0, 0, 1], sizes = [1, 2, 1], strides = [1, 1, 1]} : vector<3x2x2xf32> to vector<1x2x1xf32>
    %52 = vector.shape_cast %51 : vector<1x2x1xf32> to vector<2x1xf32>
    %53 = vector.broadcast %52 : vector<2x1xf32> to vector<2x16xf32>
    %54 = arith.addf %50, %53 : vector<2x16xf32>
    %55 = arith.maximumf %35, %54 : vector<2x16xf32>
    %cst_24 = arith.constant 0.000000e+00 : f32
    %56 = vector.broadcast %cst_24 : f32 to vector<2x16xf32>
    %57 = arith.maximumf %55, %56 : vector<2x16xf32>
    %58 = arith.subf %35, %57 : vector<2x16xf32>
    %59 = math.exp %58 : vector<2x16xf32>
    %60 = arith.subf %54, %57 : vector<2x16xf32>
    %61 = math.exp %60 : vector<2x16xf32>
    %cst_25 = arith.constant 0.000000e+00 : f32
    %62 = vector.broadcast %cst_25 : f32 to vector<2x16xf32>
    %63 = arith.subf %62, %57 : vector<2x16xf32>
    %64 = math.exp %63 : vector<2x16xf32>
    %65 = arith.addf %59, %61 : vector<2x16xf32>
    %66 = arith.addf %65, %64 : vector<2x16xf32>
    %67 = tpu.reciprocal %66 {approx = true} : vector<2x16xf32> -> vector<2x16xf32>
    %68 = arith.mulf %59, %67 : vector<2x16xf32>
    %69 = arith.addf %14, %68 : vector<2x16xf32>
    %70 = arith.mulf %61, %67 : vector<2x16xf32>
    %71 = arith.addf %15, %70 : vector<2x16xf32>
    %72 = arith.mulf %64, %67 : vector<2x16xf32>
    %73 = arith.addf %16, %72 : vector<2x16xf32>
    %c8 = arith.constant 8 : index
    %74 = memref.load %arg6[%c8] : memref<24xf32, #tpu.memory_space<smem>>
    %75 = vector.broadcast %74 : f32 to vector<2x16xf32>
    %76 = arith.mulf %1, %75 : vector<2x16xf32>
    %c10 = arith.constant 10 : index
    %77 = memref.load %arg6[%c10] : memref<24xf32, #tpu.memory_space<smem>>
    %78 = vector.broadcast %77 : f32 to vector<2x16xf32>
    %79 = arith.mulf %3, %78 : vector<2x16xf32>
    %80 = arith.addf %76, %79 : vector<2x16xf32>
    %c12 = arith.constant 12 : index
    %81 = memref.load %arg6[%c12] : memref<24xf32, #tpu.memory_space<smem>>
    %82 = vector.broadcast %81 : f32 to vector<2x16xf32>
    %83 = arith.mulf %5, %82 : vector<2x16xf32>
    %84 = arith.addf %80, %83 : vector<2x16xf32>
    %c14 = arith.constant 14 : index
    %85 = memref.load %arg6[%c14] : memref<24xf32, #tpu.memory_space<smem>>
    %86 = vector.broadcast %85 : f32 to vector<2x16xf32>
    %87 = arith.mulf %7, %86 : vector<2x16xf32>
    %88 = arith.addf %84, %87 : vector<2x16xf32>
    %89 = vector.extract_strided_slice %13 {offsets = [1, 0, 0], sizes = [1, 2, 1], strides = [1, 1, 1]} : vector<3x2x2xf32> to vector<1x2x1xf32>
    %90 = vector.shape_cast %89 : vector<1x2x1xf32> to vector<2x1xf32>
    %91 = vector.broadcast %90 : vector<2x1xf32> to vector<2x16xf32>
    %92 = arith.addf %88, %91 : vector<2x16xf32>
    %c9 = arith.constant 9 : index
    %93 = memref.load %arg6[%c9] : memref<24xf32, #tpu.memory_space<smem>>
    %94 = vector.broadcast %93 : f32 to vector<2x16xf32>
    %95 = arith.mulf %1, %94 : vector<2x16xf32>
    %c11 = arith.constant 11 : index
    %96 = memref.load %arg6[%c11] : memref<24xf32, #tpu.memory_space<smem>>
    %97 = vector.broadcast %96 : f32 to vector<2x16xf32>
    %98 = arith.mulf %3, %97 : vector<2x16xf32>
    %99 = arith.addf %95, %98 : vector<2x16xf32>
    %c13 = arith.constant 13 : index
    %100 = memref.load %arg6[%c13] : memref<24xf32, #tpu.memory_space<smem>>
    %101 = vector.broadcast %100 : f32 to vector<2x16xf32>
    %102 = arith.mulf %5, %101 : vector<2x16xf32>
    %103 = arith.addf %99, %102 : vector<2x16xf32>
    %c15 = arith.constant 15 : index
    %104 = memref.load %arg6[%c15] : memref<24xf32, #tpu.memory_space<smem>>
    %105 = vector.broadcast %104 : f32 to vector<2x16xf32>
    %106 = arith.mulf %7, %105 : vector<2x16xf32>
    %107 = arith.addf %103, %106 : vector<2x16xf32>
    %108 = vector.extract_strided_slice %13 {offsets = [1, 0, 1], sizes = [1, 2, 1], strides = [1, 1, 1]} : vector<3x2x2xf32> to vector<1x2x1xf32>
    %109 = vector.shape_cast %108 : vector<1x2x1xf32> to vector<2x1xf32>
    %110 = vector.broadcast %109 : vector<2x1xf32> to vector<2x16xf32>
    %111 = arith.addf %107, %110 : vector<2x16xf32>
    %112 = arith.maximumf %92, %111 : vector<2x16xf32>
    %cst_26 = arith.constant 0.000000e+00 : f32
    %113 = vector.broadcast %cst_26 : f32 to vector<2x16xf32>
    %114 = arith.maximumf %112, %113 : vector<2x16xf32>
    %115 = arith.subf %92, %114 : vector<2x16xf32>
    %116 = math.exp %115 : vector<2x16xf32>
    %117 = arith.subf %111, %114 : vector<2x16xf32>
    %118 = math.exp %117 : vector<2x16xf32>
    %cst_27 = arith.constant 0.000000e+00 : f32
    %119 = vector.broadcast %cst_27 : f32 to vector<2x16xf32>
    %120 = arith.subf %119, %114 : vector<2x16xf32>
    %121 = math.exp %120 : vector<2x16xf32>
    %122 = arith.addf %116, %118 : vector<2x16xf32>
    %123 = arith.addf %122, %121 : vector<2x16xf32>
    %124 = tpu.reciprocal %123 {approx = true} : vector<2x16xf32> -> vector<2x16xf32>
    %125 = arith.mulf %116, %124 : vector<2x16xf32>
    %126 = arith.addf %69, %125 : vector<2x16xf32>
    %127 = arith.mulf %118, %124 : vector<2x16xf32>
    %128 = arith.addf %71, %127 : vector<2x16xf32>
    %129 = arith.mulf %121, %124 : vector<2x16xf32>
    %130 = arith.addf %73, %129 : vector<2x16xf32>
    %c16 = arith.constant 16 : index
    %131 = memref.load %arg6[%c16] : memref<24xf32, #tpu.memory_space<smem>>
    %132 = vector.broadcast %131 : f32 to vector<2x16xf32>
    %133 = arith.mulf %1, %132 : vector<2x16xf32>
    %c18 = arith.constant 18 : index
    %134 = memref.load %arg6[%c18] : memref<24xf32, #tpu.memory_space<smem>>
    %135 = vector.broadcast %134 : f32 to vector<2x16xf32>
    %136 = arith.mulf %3, %135 : vector<2x16xf32>
    %137 = arith.addf %133, %136 : vector<2x16xf32>
    %c20 = arith.constant 20 : index
    %138 = memref.load %arg6[%c20] : memref<24xf32, #tpu.memory_space<smem>>
    %139 = vector.broadcast %138 : f32 to vector<2x16xf32>
    %140 = arith.mulf %5, %139 : vector<2x16xf32>
    %141 = arith.addf %137, %140 : vector<2x16xf32>
    %c22 = arith.constant 22 : index
    %142 = memref.load %arg6[%c22] : memref<24xf32, #tpu.memory_space<smem>>
    %143 = vector.broadcast %142 : f32 to vector<2x16xf32>
    %144 = arith.mulf %7, %143 : vector<2x16xf32>
    %145 = arith.addf %141, %144 : vector<2x16xf32>
    %146 = vector.extract_strided_slice %13 {offsets = [2, 0, 0], sizes = [1, 2, 1], strides = [1, 1, 1]} : vector<3x2x2xf32> to vector<1x2x1xf32>
    %147 = vector.shape_cast %146 : vector<1x2x1xf32> to vector<2x1xf32>
    %148 = vector.broadcast %147 : vector<2x1xf32> to vector<2x16xf32>
    %149 = arith.addf %145, %148 : vector<2x16xf32>
    %c17 = arith.constant 17 : index
    %150 = memref.load %arg6[%c17] : memref<24xf32, #tpu.memory_space<smem>>
    %151 = vector.broadcast %150 : f32 to vector<2x16xf32>
    %152 = arith.mulf %1, %151 : vector<2x16xf32>
    %c19 = arith.constant 19 : index
    %153 = memref.load %arg6[%c19] : memref<24xf32, #tpu.memory_space<smem>>
    %154 = vector.broadcast %153 : f32 to vector<2x16xf32>
    %155 = arith.mulf %3, %154 : vector<2x16xf32>
    %156 = arith.addf %152, %155 : vector<2x16xf32>
    %c21 = arith.constant 21 : index
    %157 = memref.load %arg6[%c21] : memref<24xf32, #tpu.memory_space<smem>>
    %158 = vector.broadcast %157 : f32 to vector<2x16xf32>
    %159 = arith.mulf %5, %158 : vector<2x16xf32>
    %160 = arith.addf %156, %159 : vector<2x16xf32>
    %c23 = arith.constant 23 : index
    %161 = memref.load %arg6[%c23] : memref<24xf32, #tpu.memory_space<smem>>
    %162 = vector.broadcast %161 : f32 to vector<2x16xf32>
    %163 = arith.mulf %7, %162 : vector<2x16xf32>
    %164 = arith.addf %160, %163 : vector<2x16xf32>
    %165 = vector.extract_strided_slice %13 {offsets = [2, 0, 1], sizes = [1, 2, 1], strides = [1, 1, 1]} : vector<3x2x2xf32> to vector<1x2x1xf32>
    %166 = vector.shape_cast %165 : vector<1x2x1xf32> to vector<2x1xf32>
    %167 = vector.broadcast %166 : vector<2x1xf32> to vector<2x16xf32>
    %168 = arith.addf %164, %167 : vector<2x16xf32>
    %169 = arith.maximumf %149, %168 : vector<2x16xf32>
    %cst_28 = arith.constant 0.000000e+00 : f32
    %170 = vector.broadcast %cst_28 : f32 to vector<2x16xf32>
    %171 = arith.maximumf %169, %170 : vector<2x16xf32>
    %172 = arith.subf %149, %171 : vector<2x16xf32>
    %173 = math.exp %172 : vector<2x16xf32>
    %174 = arith.subf %168, %171 : vector<2x16xf32>
    %175 = math.exp %174 : vector<2x16xf32>
    %cst_29 = arith.constant 0.000000e+00 : f32
    %176 = vector.broadcast %cst_29 : f32 to vector<2x16xf32>
    %177 = arith.subf %176, %171 : vector<2x16xf32>
    %178 = math.exp %177 : vector<2x16xf32>
    %179 = arith.addf %173, %175 : vector<2x16xf32>
    %180 = arith.addf %179, %178 : vector<2x16xf32>
    %181 = tpu.reciprocal %180 {approx = true} : vector<2x16xf32> -> vector<2x16xf32>
    %182 = arith.mulf %173, %181 : vector<2x16xf32>
    %183 = arith.addf %126, %182 : vector<2x16xf32>
    %184 = arith.mulf %175, %181 : vector<2x16xf32>
    %185 = arith.addf %128, %184 : vector<2x16xf32>
    %186 = arith.mulf %178, %181 : vector<2x16xf32>
    %187 = arith.addf %130, %186 : vector<2x16xf32>
    %cst_30 = arith.constant 0.333333343 : f32
    %188 = vector.broadcast %cst_30 : f32 to vector<2x16xf32>
    %189 = arith.mulf %183, %188 : vector<2x16xf32>
    %c0_31 = arith.constant 0 : index
    %c0_32 = arith.constant 0 : index
    %c0_33 = arith.constant 0 : index
    %190 = vector.load %arg7[%c0_31, %c0_32, %c0_33] : memref<2x3x16xf32, #tpu.memory_space<vmem>>, vector<2x1x16xf32>
    %191 = vector.shape_cast %190 : vector<2x1x16xf32> to vector<2x16xf32>
    %192 = vector.shape_cast %189 : vector<2x16xf32> to vector<2x1x16xf32>
    tpu.vector_store %arg7[%c0_31, %c0_32, %c0_33], %192 {strides = array<i32>} : memref<2x3x16xf32, #tpu.memory_space<vmem>>, vector<2x1x16xf32>,
    %cst_34 = arith.constant 0.333333343 : f32
    %193 = vector.broadcast %cst_34 : f32 to vector<2x16xf32>
    %194 = arith.mulf %185, %193 : vector<2x16xf32>
    %c0_35 = arith.constant 0 : index
    %c1_36 = arith.constant 1 : index
    %c0_37 = arith.constant 0 : index
    %195 = vector.load %arg7[%c0_35, %c1_36, %c0_37] : memref<2x3x16xf32, #tpu.memory_space<vmem>>, vector<2x1x16xf32>
    %196 = vector.shape_cast %195 : vector<2x1x16xf32> to vector<2x16xf32>
    %197 = vector.shape_cast %194 : vector<2x16xf32> to vector<2x1x16xf32>
    tpu.vector_store %arg7[%c0_35, %c1_36, %c0_37], %197 {strides = array<i32>} : memref<2x3x16xf32, #tpu.memory_space<vmem>>, vector<2x1x16xf32>,
    %cst_38 = arith.constant 0.333333343 : f32
    %198 = vector.broadcast %cst_38 : f32 to vector<2x16xf32>
    %199 = arith.mulf %187, %198 : vector<2x16xf32>
    %c0_39 = arith.constant 0 : index
    %c2_40 = arith.constant 2 : index
    %c0_41 = arith.constant 0 : index
    %200 = vector.load %arg7[%c0_39, %c2_40, %c0_41] : memref<2x3x16xf32, #tpu.memory_space<vmem>>, vector<2x1x16xf32>
    %201 = vector.shape_cast %200 : vector<2x1x16xf32> to vector<2x16xf32>
    %202 = vector.shape_cast %199 : vector<2x16xf32> to vector<2x1x16xf32>
    tpu.vector_store %arg7[%c0_39, %c2_40, %c0_41], %202 {strides = array<i32>} : memref<2x3x16xf32, #tpu.memory_space<vmem>>, vector<2x1x16xf32>,
    return
  }
  func.func @transform_0(%arg0: i32, %arg1: i32) -> (i32, i32, i32) {
    %c0_i32 = arith.constant 0 : i32
    %c0_i32_0 = arith.constant 0 : i32
    return %arg0, %c0_i32, %arg1 : i32, i32, i32
  }
  func.func @transform_1(%arg0: i32, %arg1: i32) -> (i32, i32, i32) {
    %c0_i32 = arith.constant 0 : i32
    %c0_i32_0 = arith.constant 0 : i32
    %c0_i32_1 = arith.constant 0 : i32
    return %c0_i32, %arg0, %c0_i32_0 : i32, i32, i32
  }
  func.func @transform_2(%arg0: i32, %arg1: i32) -> (i32, i32, i32) {
    %c0_i32 = arith.constant 0 : i32
    %c0_i32_0 = arith.constant 0 : i32
    %c0_i32_1 = arith.constant 0 : i32
    %c0_i32_2 = arith.constant 0 : i32
    return %c0_i32, %c0_i32_0, %c0_i32_1 : i32, i32, i32
  }
  func.func @transform_3(%arg0: i32, %arg1: i32) -> (i32, i32, i32) {
    %c0_i32 = arith.constant 0 : i32
    %c0_i32_0 = arith.constant 0 : i32
    %c0_i32_1 = arith.constant 0 : i32
    %c0_i32_2 = arith.constant 0 : i32
    return %c0_i32, %c0_i32_0, %c0_i32_1 : i32, i32, i32
  }
  func.func @transform_4(%arg0: i32, %arg1: i32) -> i32 {
    %c0_i32 = arith.constant 0 : i32
    %c0_i32_0 = arith.constant 0 : i32
    return %c0_i32 : i32
  }
  func.func @transform_5(%arg0: i32, %arg1: i32) -> (i32, i32, i32) {
    %c0_i32 = arith.constant 0 : i32
    %c0_i32_0 = arith.constant 0 : i32
    return %arg0, %c0_i32, %arg1 : i32, i32, i32
  }
}

</mosaic_0001>

<llo_original>
// kernel: tpu_custom_call.1
$region0: #{tpu_custom_call.1}
  #allocation0 [shape = 'u32[]', space=smem, size = 0x4, offset = 0x4, fixed_abs, tag = 'smem constant byte address 0x4 - core index']
  #allocation1 [shape = 'u32[144,128]{1,0:T(1,128)}', space=vmem, size = 0x12000, scoped, tag = 'internal scratch']
  %s0 = inlined_call_operand.vmem [shape: f32[2,4,16], index: 0, kind: input, shape index: {}]
  %s1 = inlined_call_operand.vmem [shape: f32[3,2,32], index: 1, kind: input, shape index: {}]
  %s2 = inlined_call_operand.vmem [shape: f32[3,32,2], index: 2, kind: input, shape index: {}]
  %s3 = inlined_call_operand.vmem [shape: f32[3,1,2], index: 3, kind: input, shape index: {}]
  %s4 = inlined_call_operand.vmem [shape: f32[24], index: 4, kind: input, shape index: {}]
  %s5 = inlined_call_operand.vmem [shape: f32[2,3,16], index: 5, kind: output, shape index: {}]
  %s6 = sld [smem:[#allocation0]]
  $region34: #{tpu_custom_call.1} parent=0
    _
  %s8 = ssub.s32 1, %s6
  %s9 = scalar_select 0, %s8, %s6
  $region1: #{tpu_custom_call.1} parent=0
    #allocation2 [shape = 'u8[512]{0}', space=smem, size = 0x200, scoped, tag = 'input window, operand 4, single buffered']
    #allocation3 [shape = 's32[1]{0}', space=sflag, size = 0x4, scoped, tag = 'scoped memory for tpu_custom_call.1']
    %10 = vsyncpa [#allocation3], 0
    // Predicated region
    $region2: #{tpu_custom_call.1} parent=1 // pred_check
      _
    $region3: #{tpu_custom_call.1} parent=1 // pred_check_branch
      %12 = sbr.rel (0) target = $region5
    $region4: #{tpu_custom_call.1} parent=1 // pred_region
      _
    $region5: #{tpu_custom_call.1} parent=1 // pred_fallthru
      _
    // Predicated region
    $region6: #{tpu_custom_call.1} parent=1 // pred_check
      _
    $region7: #{tpu_custom_call.1} parent=1 // pred_check_branch
      %14 = sbr.rel (0) target = $region9
    $region8: #{tpu_custom_call.1} parent=1 // pred_region
      _
    $region9: #{tpu_custom_call.1} parent=1 // pred_fallthru
      _
    // Predicated region
    $region10: #{tpu_custom_call.1} parent=1 // pred_check
      _
    $region11: #{tpu_custom_call.1} parent=1 // pred_check_branch
      %16 = sbr.rel (0) target = $region13
    $region12: #{tpu_custom_call.1} parent=1 // pred_region
      _
    $region13: #{tpu_custom_call.1} parent=1 // pred_fallthru
      _
    // Predicated region
    $region14: #{tpu_custom_call.1} parent=1 // pred_check
      _
    $region15: #{tpu_custom_call.1} parent=1 // pred_check_branch
      %18 = sbr.rel (0) target = $region17
    $region16: #{tpu_custom_call.1} parent=1 // pred_region
      _
    $region17: #{tpu_custom_call.1} parent=1 // pred_fallthru
      _
    // Predicated region
    $region18: #{tpu_custom_call.1} parent=1 // pred_check
      _
    $region19: #{tpu_custom_call.1} parent=1 // pred_check_branch
      %20 = sbr.rel (0) target = $region21
    $region20: #{tpu_custom_call.1} parent=1 // pred_region
      %s22 = ssub.s32 16, 16
      %23 = vsyncadd [#allocation3], %s22
      %s25 = sshll.u32 %s4, 4
      %s26 = int_to_ptr.vmem [resolvable:$true] %s25
      %28 = dma.vmem_to_smem %s26, 16, [#allocation2], [#allocation3]
    $region21: #{tpu_custom_call.1} parent=1 // pred_fallthru
      _
    // Predicated region
    $region22: #{tpu_custom_call.1} parent=1 // pred_check
      _
    $region23: #{tpu_custom_call.1} parent=1 // pred_check_branch
      %30 = sbr.rel (0) target = $region25
    $region24: #{tpu_custom_call.1} parent=1 // pred_region
      %31 = dma.done [#allocation3], 16
    $region25: #{tpu_custom_call.1} parent=1 // pred_fallthru
      _
    %32 = sfence
    %v33 = vld [vmem:[%s0] sm:$0x1]
    %v34 = vld [vmem:[%s0 + $0x4] sm:$0x1]
    %v35 = vld [vmem:[%s0 + $0x1] sm:$0x1]
    %v36 = vld [vmem:[%s0 + $0x5] sm:$0x1]
    %v37 = vld [vmem:[%s0 + $0x2] sm:$0x1]
    %v38 = vld [vmem:[%s0 + $0x6] sm:$0x1]
    %v39 = vld [vmem:[%s0 + $0x3] sm:$0x1]
    %v40 = vld [vmem:[%s0 + $0x7] sm:$0x1]
    %v41 = vld [vmem:[%s1] sm:$0x3]
    %v42 = vld [vmem:[%s1 + $0x2] sm:$0x3]
    %v43 = vld [vmem:[%s1 + $0x4] sm:$0x3]
    %v44 = vld [vmem:[%s2] sm:$0xff]
    %v45 = vld [vmem:[%s2 + $0x8] sm:$0xff]
    %v46 = vld [vmem:[%s2 + $0x10] sm:$0xff]
    %v47 = vld [vmem:[%s2 + $0x18] sm:$0xff]
    %v48 = vld [vmem:[%s2 + $0x20] sm:$0xff]
    %v49 = vld [vmem:[%s2 + $0x28] sm:$0xff]
    %v50 = vld [vmem:[%s2 + $0x30] sm:$0xff]
    %v51 = vld [vmem:[%s2 + $0x38] sm:$0xff]
    %v52 = vld [vmem:[%s2 + $0x40] sm:$0xff]
    %v53 = vld [vmem:[%s2 + $0x48] sm:$0xff]
    %v54 = vld [vmem:[%s2 + $0x50] sm:$0xff]
    %v55 = vld [vmem:[%s2 + $0x58] sm:$0xff]
    %v56 = vld [vmem:[%s3] sm:$0x1]
    %v57 = vld [vmem:[%s3 + $0x1] sm:$0x1]
    %v58 = vld [vmem:[%s3 + $0x2] sm:$0x1]
    %v62 = vlaneseq
    %v63 = vshrl.u32 %v62, 7
    %v64 = vsub.s32 0, %v63
    %v65 = vrot.slane %v56, %v64
    %v66 = vlaneseq
    %v67 = vshrl.u32 %v66, 7
    %v68 = vsub.s32 0, %v67
    %v69 = vrot.slane %v57, %v68
    %v70 = vlaneseq
    %v71 = vshrl.u32 %v70, 7
    %v72 = vsub.s32 0, %v71
    %v73 = vrot.slane %v58, %v72
    %vm77 = vcmask 261120
    %v79 = vsel %vm77, %v41, 0
    %81 = vmatprep.subr.mxu0 0.0
    %82 = vmatpush1.msra.mxu0 %v44
    %83 = vmatprep.subr.mxu0 0.0
    %84 = vmatpush1.msra.mxu0 %v45
    %85 = vmatprep.subr.mxu0 0.0
    %86 = vmatpush1.msra.mxu0 %v46
    %87 = vmatprep.subr.mxu0 0.0
    %88 = vmatpush1.msra.mxu0 %v47
    %89 = vmatprep.subr.mxu0 0.0
    %90 = vmatpush1.msra.mxu0 0.0
    %91 = vmatprep.subr.mxu0 0.0
    %92 = vmatpush1.msra.mxu0 0.0
    %93 = vmatprep.subr.mxu0 0.0
    %94 = vmatpush1.msra.mxu0 0.0
    %95 = vmatprep.subr.mxu0 0.0
    %96 = vmatpush1.msra.mxu0 0.0
    %97 = vmatprep.subr.mxu0 0.0
    %98 = vmatpush1.msra.mxu0 0.0
    %99 = vmatprep.subr.mxu0 0.0
    %100 = vmatpush1.msra.mxu0 0.0
    %101 = vmatprep.subr.mxu0 0.0
    %102 = vmatpush1.msra.mxu0 0.0
    %103 = vmatprep.subr.mxu0 0.0
    %104 = vmatpush1.msra.mxu0 0.0
    %105 = vmatprep.subr.mxu0 0.0
    %106 = vmatpush1.msra.mxu0 0.0
    %107 = vmatprep.subr.mxu0 0.0
    %108 = vmatpush1.msra.mxu0 0.0
    %109 = vmatprep.subr.mxu0 0.0
    %110 = vmatpush1.msra.mxu0 0.0
    %111 = vmatprep.subr.mxu0 0.0
    %112 = vmatpush1.msra.mxu0 0.0
    %113 = vmatprep.subr.mxu0 0.0
    %114 = vmatpush1.msra.mxu0 0.0
    %115 = vmatprep.subr.mxu0 0.0
    %116 = vmatpush1.msra.mxu0 0.0
    %117 = vmatprep.subr.mxu0 0.0
    %118 = vmatpush1.msra.mxu0 0.0
    %119 = vmatprep.subr.mxu0 0.0
    %120 = vmatpush1.msra.mxu0 0.0
    %121 = vmatprep.subr.mxu0 0.0
    %122 = vmatpush1.msra.mxu0 0.0
    %123 = vmatprep.subr.mxu0 0.0
    %124 = vmatpush1.msra.mxu0 0.0
    %125 = vmatprep.subr.mxu0 0.0
    %126 = vmatpush1.msra.mxu0 0.0
    %127 = vmatprep.subr.mxu0 0.0
    %128 = vmatpush1.msra.mxu0 0.0
    %129 = vmatprep.subr.mxu0 0.0
    %130 = vmatpush1.msra.mxu0 0.0
    %131 = vmatprep.subr.mxu0 0.0
    %132 = vmatpush1.msra.mxu0 0.0
    %133 = vmatprep.subr.mxu0 0.0
    %134 = vmatpush1.msra.mxu0 0.0
    %135 = vmatprep.subr.mxu0 0.0
    %136 = vmatpush1.msra.mxu0 0.0
    %137 = vmatprep.subr.mxu0 0.0
    %138 = vmatpush1.msra.mxu0 0.0
    %139 = vmatprep.subr.mxu0 0.0
    %140 = vmatpush1.msra.mxu0 0.0
    %141 = vmatprep.subr.mxu0 0.0
    %142 = vmatpush1.msra.mxu0 0.0
    %143 = vmatprep.subr.mxu0 0.0
    %144 = vmatpush1.msra.mxu0 0.0
    %145 = vmatprep.mubr.f32.mxu0 0.0
    %146 = vmatmul.mubr.f32.gmra.mrb[0].mxu0 %v79
    %v147 = vpop.f32.mrb[0].mxu0
    %v148 = vadd.f32 %v65, %v147
    %v149 = vpop.f32.mrb[0].mxu0
    %150 = vdwg.mxu0
    %v152 = vsel %vm77, %v42, 0
    %154 = vmatprep.subr.mxu0 0.0
    %155 = vmatpush1.msra.mxu0 %v48
    %156 = vmatprep.subr.mxu0 0.0
    %157 = vmatpush1.msra.mxu0 %v49
    %158 = vmatprep.subr.mxu0 0.0
    %159 = vmatpush1.msra.mxu0 %v50
    %160 = vmatprep.subr.mxu0 0.0
    %161 = vmatpush1.msra.mxu0 %v51
    %162 = vmatprep.subr.mxu0 0.0
    %163 = vmatpush1.msra.mxu0 0.0
    %164 = vmatprep.subr.mxu0 0.0
    %165 = vmatpush1.msra.mxu0 0.0
    %166 = vmatprep.subr.mxu0 0.0
    %167 = vmatpush1.msra.mxu0 0.0
    %168 = vmatprep.subr.mxu0 0.0
    %169 = vmatpush1.msra.mxu0 0.0
    %170 = vmatprep.subr.mxu0 0.0
    %171 = vmatpush1.msra.mxu0 0.0
    %172 = vmatprep.subr.mxu0 0.0
    %173 = vmatpush1.msra.mxu0 0.0
    %174 = vmatprep.subr.mxu0 0.0
    %175 = vmatpush1.msra.mxu0 0.0
    %176 = vmatprep.subr.mxu0 0.0
    %177 = vmatpush1.msra.mxu0 0.0
    %178 = vmatprep.subr.mxu0 0.0
    %179 = vmatpush1.msra.mxu0 0.0
    %180 = vmatprep.subr.mxu0 0.0
    %181 = vmatpush1.msra.mxu0 0.0
    %182 = vmatprep.subr.mxu0 0.0
    %183 = vmatpush1.msra.mxu0 0.0
    %184 = vmatprep.subr.mxu0 0.0
    %185 = vmatpush1.msra.mxu0 0.0
    %186 = vmatprep.subr.mxu0 0.0
    %187 = vmatpush1.msra.mxu0 0.0
    %188 = vmatprep.subr.mxu0 0.0
    %189 = vmatpush1.msra.mxu0 0.0
    %190 = vmatprep.subr.mxu0 0.0
    %191 = vmatpush1.msra.mxu0 0.0
    %192 = vmatprep.subr.mxu0 0.0
    %193 = vmatpush1.msra.mxu0 0.0
    %194 = vmatprep.subr.mxu0 0.0
    %195 = vmatpush1.msra.mxu0 0.0
    %196 = vmatprep.subr.mxu0 0.0
    %197 = vmatpush1.msra.mxu0 0.0
    %198 = vmatprep.subr.mxu0 0.0
    %199 = vmatpush1.msra.mxu0 0.0
    %200 = vmatprep.subr.mxu0 0.0
    %201 = vmatpush1.msra.mxu0 0.0
    %202 = vmatprep.subr.mxu0 0.0
    %203 = vmatpush1.msra.mxu0 0.0
    %204 = vmatprep.subr.mxu0 0.0
    %205 = vmatpush1.msra.mxu0 0.0
    %206 = vmatprep.subr.mxu0 0.0
    %207 = vmatpush1.msra.mxu0 0.0
    %208 = vmatprep.subr.mxu0 0.0
    %209 = vmatpush1.msra.mxu0 0.0
    %210 = vmatprep.subr.mxu0 0.0
    %211 = vmatpush1.msra.mxu0 0.0
    %212 = vmatprep.subr.mxu0 0.0
    %213 = vmatpush1.msra.mxu0 0.0
    %214 = vmatprep.subr.mxu0 0.0
    %215 = vmatpush1.msra.mxu0 0.0
    %216 = vmatprep.subr.mxu0 0.0
    %217 = vmatpush1.msra.mxu0 0.0
    %218 = vmatprep.mubr.f32.mxu0 0.0
    %219 = vmatmul.mubr.f32.gmra.mrb[0].mxu0 %v152
    %v220 = vpop.f32.mrb[0].mxu0
    %v221 = vadd.f32 %v69, %v220
    %v222 = vpop.f32.mrb[0].mxu0
    %223 = vdwg.mxu0
    %v225 = vsel %vm77, %v43, 0
    %227 = vmatprep.subr.mxu0 0.0
    %228 = vmatpush1.msra.mxu0 %v52
    %229 = vmatprep.subr.mxu0 0.0
    %230 = vmatpush1.msra.mxu0 %v53
    %231 = vmatprep.subr.mxu0 0.0
    %232 = vmatpush1.msra.mxu0 %v54
    %233 = vmatprep.subr.mxu0 0.0
    %234 = vmatpush1.msra.mxu0 %v55
    %235 = vmatprep.subr.mxu0 0.0
    %236 = vmatpush1.msra.mxu0 0.0
    %237 = vmatprep.subr.mxu0 0.0
    %238 = vmatpush1.msra.mxu0 0.0
    %239 = vmatprep.subr.mxu0 0.0
    %240 = vmatpush1.msra.mxu0 0.0
    %241 = vmatprep.subr.mxu0 0.0
    %242 = vmatpush1.msra.mxu0 0.0
    %243 = vmatprep.subr.mxu0 0.0
    %244 = vmatpush1.msra.mxu0 0.0
    %245 = vmatprep.subr.mxu0 0.0
    %246 = vmatpush1.msra.mxu0 0.0
    %247 = vmatprep.subr.mxu0 0.0
    %248 = vmatpush1.msra.mxu0 0.0
    %249 = vmatprep.subr.mxu0 0.0
    %250 = vmatpush1.msra.mxu0 0.0
    %251 = vmatprep.subr.mxu0 0.0
    %252 = vmatpush1.msra.mxu0 0.0
    %253 = vmatprep.subr.mxu0 0.0
    %254 = vmatpush1.msra.mxu0 0.0
    %255 = vmatprep.subr.mxu0 0.0
    %256 = vmatpush1.msra.mxu0 0.0
    %257 = vmatprep.subr.mxu0 0.0
    %258 = vmatpush1.msra.mxu0 0.0
    %259 = vmatprep.subr.mxu0 0.0
    %260 = vmatpush1.msra.mxu0 0.0
    %261 = vmatprep.subr.mxu0 0.0
    %262 = vmatpush1.msra.mxu0 0.0
    %263 = vmatprep.subr.mxu0 0.0
    %264 = vmatpush1.msra.mxu0 0.0
    %265 = vmatprep.subr.mxu0 0.0
    %266 = vmatpush1.msra.mxu0 0.0
    %267 = vmatprep.subr.mxu0 0.0
    %268 = vmatpush1.msra.mxu0 0.0
    %269 = vmatprep.subr.mxu0 0.0
    %270 = vmatpush1.msra.mxu0 0.0
    %271 = vmatprep.subr.mxu0 0.0
    %272 = vmatpush1.msra.mxu0 0.0
    %273 = vmatprep.subr.mxu0 0.0
    %274 = vmatpush1.msra.mxu0 0.0
    %275 = vmatprep.subr.mxu0 0.0
    %276 = vmatpush1.msra.mxu0 0.0
    %277 = vmatprep.subr.mxu0 0.0
    %278 = vmatpush1.msra.mxu0 0.0
    %279 = vmatprep.subr.mxu0 0.0
    %280 = vmatpush1.msra.mxu0 0.0
    %281 = vmatprep.subr.mxu0 0.0
    %282 = vmatpush1.msra.mxu0 0.0
    %283 = vmatprep.subr.mxu0 0.0
    %284 = vmatpush1.msra.mxu0 0.0
    %285 = vmatprep.subr.mxu0 0.0
    %286 = vmatpush1.msra.mxu0 0.0
    %287 = vmatprep.subr.mxu0 0.0
    %288 = vmatpush1.msra.mxu0 0.0
    %289 = vmatprep.subr.mxu0 0.0
    %290 = vmatpush1.msra.mxu0 0.0
    %291 = vmatprep.mubr.f32.mxu0 0.0
    %292 = vmatmul.mubr.f32.gmra.mrb[0].mxu0 %v225
    %v293 = vpop.f32.mrb[0].mxu0
    %v294 = vadd.f32 %v73, %v293
    %v295 = vpop.f32.mrb[0].mxu0
    %296 = vdwg.mxu0
    %s297 = sld [smem:[#allocation2]]
    %v298 = vstv %s297
    %v299 = vmul.f32 %v33, %v298
    %v300 = vmul.f32 %v34, %v298
    %s301 = sld [smem:[#allocation2 + $0x2]]
    %v302 = vstv %s301
    %v303 = vmul.f32 %v35, %v302
    %v304 = vmul.f32 %v36, %v302
    %v305 = vadd.f32 %v299, %v303
    %v306 = vadd.f32 %v300, %v304
    %s307 = sld [smem:[#allocation2 + $0x4]]
    %v308 = vstv %s307
    %v309 = vmul.f32 %v37, %v308
    %v310 = vmul.f32 %v38, %v308
    %v311 = vadd.f32 %v305, %v309
    %v312 = vadd.f32 %v306, %v310
    %s313 = sld [smem:[#allocation2 + $0x6]]
    %v314 = vstv %s313
    %v315 = vmul.f32 %v39, %v314
    %v316 = vmul.f32 %v40, %v314
    %v317 = vadd.f32 %v311, %v315
    %v318 = vadd.f32 %v312, %v316
    %320 = vset.pattern.permute.xlu0 0
    %321 = vperm.xlu0 %320, %v148
    %v322 = vpop.permute.xlu0 %321
    %v323 = vrot.slane %v322, 1
    %v326 = vadd.f32 %v317, %v322
    %v327 = vadd.f32 %v318, %v323
    %s328 = sld [smem:[#allocation2 + $0x1]]
    %v329 = vstv %s328
    %v330 = vmul.f32 %v33, %v329
    %v331 = vmul.f32 %v34, %v329
    %s332 = sld [smem:[#allocation2 + $0x3]]
    %v333 = vstv %s332
    %v334 = vmul.f32 %v35, %v333
    %v335 = vmul.f32 %v36, %v333
    %v336 = vadd.f32 %v330, %v334
    %v337 = vadd.f32 %v331, %v335
    %s338 = sld [smem:[#allocation2 + $0x5]]
    %v339 = vstv %s338
    %v340 = vmul.f32 %v37, %v339
    %v341 = vmul.f32 %v38, %v339
    %v342 = vadd.f32 %v336, %v340
    %v343 = vadd.f32 %v337, %v341
    %s344 = sld [smem:[#allocation2 + $0x7]]
    %v345 = vstv %s344
    %v346 = vmul.f32 %v39, %v345
    %v347 = vmul.f32 %v40, %v345
    %v348 = vadd.f32 %v342, %v346
    %v349 = vadd.f32 %v343, %v347
    %350 = vset.pattern.permute.xlu0 1
    %351 = vperm.xlu0 %350, %v148
    %v352 = vpop.permute.xlu0 %351
    %v353 = vrot.slane %v352, 1
    %v356 = vadd.f32 %v348, %v352
    %v357 = vadd.f32 %v349, %v353
    %v358 = vmax.f32 %v326, %v356
    %v359 = vmax.f32 %v327, %v357
    %v360 = vmax.f32 %v358, 0.0
    %v361 = vmax.f32 %v359, 0.0
    %v362 = vsub.f32 %v326, %v360
    %v363 = vsub.f32 %v327, %v361
    %v364 = vmul.f32 %v362, 1.442695
    %v365 = vpow.pop %v364
    %v366 = vmul.f32 %v363, 1.442695
    %v367 = vpow.pop %v366
    %v368 = vsub.f32 %v356, %v360
    %v369 = vsub.f32 %v357, %v361
    %v370 = vmul.f32 %v368, 1.442695
    %v371 = vpow.pop %v370
    %v372 = vmul.f32 %v369, 1.442695
    %v373 = vpow.pop %v372
    %v374 = vsub.f32 0.0, %v360
    %v375 = vsub.f32 0.0, %v361
    %v376 = vmul.f32 %v374, 1.442695
    %v377 = vpow.pop %v376
    %v378 = vmul.f32 %v375, 1.442695
    %v379 = vpow.pop %v378
    %v380 = vadd.f32 %v365, %v371
    %v381 = vadd.f32 %v367, %v373
    %v382 = vadd.f32 %v380, %v377
    %v383 = vadd.f32 %v381, %v379
    %v384 = vrcp.pop %v382
    %v385 = vrcp.pop %v383
    %v386 = vmul.f32 %v365, %v384
    %v387 = vmul.f32 %v367, %v385
    %v388 = vadd.f32 %v386, 0.0
    %v389 = vadd.f32 %v387, 0.0
    %v390 = vmul.f32 %v371, %v384
    %v391 = vmul.f32 %v373, %v385
    %v392 = vadd.f32 %v390, 0.0
    %v393 = vadd.f32 %v391, 0.0
    %v394 = vmul.f32 %v377, %v384
    %v395 = vmul.f32 %v379, %v385
    %v396 = vadd.f32 %v394, 0.0
    %v397 = vadd.f32 %v395, 0.0
    %s398 = sld [smem:[#allocation2 + $0x8]]
    %v399 = vstv %s398
    %v400 = vmul.f32 %v33, %v399
    %v401 = vmul.f32 %v34, %v399
    %s402 = sld [smem:[#allocation2 + $0xa]]
    %v403 = vstv %s402
    %v404 = vmul.f32 %v35, %v403
    %v405 = vmul.f32 %v36, %v403
    %v406 = vadd.f32 %v400, %v404
    %v407 = vadd.f32 %v401, %v405
    %s408 = sld [smem:[#allocation2 + $0xc]]
    %v409 = vstv %s408
    %v410 = vmul.f32 %v37, %v409
    %v411 = vmul.f32 %v38, %v409
    %v412 = vadd.f32 %v406, %v410
    %v413 = vadd.f32 %v407, %v411
    %s414 = sld [smem:[#allocation2 + $0xe]]
    %v415 = vstv %s414
    %v416 = vmul.f32 %v39, %v415
    %v417 = vmul.f32 %v40, %v415
    %v418 = vadd.f32 %v412, %v416
    %v419 = vadd.f32 %v413, %v417
    %421 = vset.pattern.permute.xlu0 0
    %422 = vperm.xlu0 %421, %v221
    %v423 = vpop.permute.xlu0 %422
    %v424 = vrot.slane %v423, 1
    %v427 = vadd.f32 %v418, %v423
    %v428 = vadd.f32 %v419, %v424
    %s429 = sld [smem:[#allocation2 + $0x9]]
    %v430 = vstv %s429
    %v431 = vmul.f32 %v33, %v430
    %v432 = vmul.f32 %v34, %v430
    %s433 = sld [smem:[#allocation2 + $0xb]]
    %v434 = vstv %s433
    %v435 = vmul.f32 %v35, %v434
    %v436 = vmul.f32 %v36, %v434
    %v437 = vadd.f32 %v431, %v435
    %v438 = vadd.f32 %v432, %v436
    %s439 = sld [smem:[#allocation2 + $0xd]]
    %v440 = vstv %s439
    %v441 = vmul.f32 %v37, %v440
    %v442 = vmul.f32 %v38, %v440
    %v443 = vadd.f32 %v437, %v441
    %v444 = vadd.f32 %v438, %v442
    %s445 = sld [smem:[#allocation2 + $0xf]]
    %v446 = vstv %s445
    %v447 = vmul.f32 %v39, %v446
    %v448 = vmul.f32 %v40, %v446
    %v449 = vadd.f32 %v443, %v447
    %v450 = vadd.f32 %v444, %v448
    %451 = vset.pattern.permute.xlu0 1
    %452 = vperm.xlu0 %451, %v221
    %v453 = vpop.permute.xlu0 %452
    %v454 = vrot.slane %v453, 1
    %v457 = vadd.f32 %v449, %v453
    %v458 = vadd.f32 %v450, %v454
    %v459 = vmax.f32 %v427, %v457
    %v460 = vmax.f32 %v428, %v458
    %v461 = vmax.f32 %v459, 0.0
    %v462 = vmax.f32 %v460, 0.0
    %v463 = vsub.f32 %v427, %v461
    %v464 = vsub.f32 %v428, %v462
    %v465 = vmul.f32 %v463, 1.442695
    %v466 = vpow.pop %v465
    %v467 = vmul.f32 %v464, 1.442695
    %v468 = vpow.pop %v467
    %v469 = vsub.f32 %v457, %v461
    %v470 = vsub.f32 %v458, %v462
    %v471 = vmul.f32 %v469, 1.442695
    %v472 = vpow.pop %v471
    %v473 = vmul.f32 %v470, 1.442695
    %v474 = vpow.pop %v473
    %v475 = vsub.f32 0.0, %v461
    %v476 = vsub.f32 0.0, %v462
    %v477 = vmul.f32 %v475, 1.442695
    %v478 = vpow.pop %v477
    %v479 = vmul.f32 %v476, 1.442695
    %v480 = vpow.pop %v479
    %v481 = vadd.f32 %v466, %v472
    %v482 = vadd.f32 %v468, %v474
    %v483 = vadd.f32 %v481, %v478
    %v484 = vadd.f32 %v482, %v480
    %v485 = vrcp.pop %v483
    %v486 = vrcp.pop %v484
    %v487 = vmul.f32 %v466, %v485
    %v488 = vmul.f32 %v468, %v486
    %v489 = vadd.f32 %v388, %v487
    %v490 = vadd.f32 %v389, %v488
    %v491 = vmul.f32 %v472, %v485
    %v492 = vmul.f32 %v474, %v486
    %v493 = vadd.f32 %v392, %v491
    %v494 = vadd.f32 %v393, %v492
    %v495 = vmul.f32 %v478, %v485
    %v496 = vmul.f32 %v480, %v486
    %v497 = vadd.f32 %v396, %v495
    %v498 = vadd.f32 %v397, %v496
    %s499 = sld [smem:[#allocation2 + $0x10]]
    %v500 = vstv %s499
    %v501 = vmul.f32 %v33, %v500
    %v502 = vmul.f32 %v34, %v500
    %s503 = sld [smem:[#allocation2 + $0x12]]
    %v504 = vstv %s503
    %v505 = vmul.f32 %v35, %v504
    %v506 = vmul.f32 %v36, %v504
    %v507 = vadd.f32 %v501, %v505
    %v508 = vadd.f32 %v502, %v506
    %s509 = sld [smem:[#allocation2 + $0x14]]
    %v510 = vstv %s509
    %v511 = vmul.f32 %v37, %v510
    %v512 = vmul.f32 %v38, %v510
    %v513 = vadd.f32 %v507, %v511
    %v514 = vadd.f32 %v508, %v512
    %s515 = sld [smem:[#allocation2 + $0x16]]
    %v516 = vstv %s515
    %v517 = vmul.f32 %v39, %v516
    %v518 = vmul.f32 %v40, %v516
    %v519 = vadd.f32 %v513, %v517
    %v520 = vadd.f32 %v514, %v518
    %522 = vset.pattern.permute.xlu0 0
    %523 = vperm.xlu0 %522, %v294
    %v524 = vpop.permute.xlu0 %523
    %v525 = vrot.slane %v524, 1
    %v528 = vadd.f32 %v519, %v524
    %v529 = vadd.f32 %v520, %v525
    %s530 = sld [smem:[#allocation2 + $0x11]]
    %v531 = vstv %s530
    %v532 = vmul.f32 %v33, %v531
    %v533 = vmul.f32 %v34, %v531
    %s534 = sld [smem:[#allocation2 + $0x13]]
    %v535 = vstv %s534
    %v536 = vmul.f32 %v35, %v535
    %v537 = vmul.f32 %v36, %v535
    %v538 = vadd.f32 %v532, %v536
    %v539 = vadd.f32 %v533, %v537
    %s540 = sld [smem:[#allocation2 + $0x15]]
    %v541 = vstv %s540
    %v542 = vmul.f32 %v37, %v541
    %v543 = vmul.f32 %v38, %v541
    %v544 = vadd.f32 %v538, %v542
    %v545 = vadd.f32 %v539, %v543
    %s546 = sld [smem:[#allocation2 + $0x17]]
    %v547 = vstv %s546
    %v548 = vmul.f32 %v39, %v547
    %v549 = vmul.f32 %v40, %v547
    %v550 = vadd.f32 %v544, %v548
    %v551 = vadd.f32 %v545, %v549
    %552 = vset.pattern.permute.xlu0 1
    %553 = vperm.xlu0 %552, %v294
    %v554 = vpop.permute.xlu0 %553
    %v555 = vrot.slane %v554, 1
    %v558 = vadd.f32 %v550, %v554
    %v559 = vadd.f32 %v551, %v555
    %v560 = vmax.f32 %v528, %v558
    %v561 = vmax.f32 %v529, %v559
    %v562 = vmax.f32 %v560, 0.0
    %v563 = vmax.f32 %v561, 0.0
    %v564 = vsub.f32 %v528, %v562
    %v565 = vsub.f32 %v529, %v563
    %v566 = vmul.f32 %v564, 1.442695
    %v567 = vpow.pop %v566
    %v568 = vmul.f32 %v565, 1.442695
    %v569 = vpow.pop %v568
    %v570 = vsub.f32 %v558, %v562
    %v571 = vsub.f32 %v559, %v563
    %v572 = vmul.f32 %v570, 1.442695
    %v573 = vpow.pop %v572
    %v574 = vmul.f32 %v571, 1.442695
    %v575 = vpow.pop %v574
    %v576 = vsub.f32 0.0, %v562
    %v577 = vsub.f32 0.0, %v563
    %v578 = vmul.f32 %v576, 1.442695
    %v579 = vpow.pop %v578
    %v580 = vmul.f32 %v577, 1.442695
    %v581 = vpow.pop %v580
    %v582 = vadd.f32 %v567, %v573
    %v583 = vadd.f32 %v569, %v575
    %v584 = vadd.f32 %v582, %v579
    %v585 = vadd.f32 %v583, %v581
    %v586 = vrcp.pop %v584
    %v587 = vrcp.pop %v585
    %v588 = vmul.f32 %v567, %v586
    %v589 = vmul.f32 %v569, %v587
    %v590 = vadd.f32 %v489, %v588
    %v591 = vadd.f32 %v490, %v589
    %v592 = vmul.f32 %v573, %v586
    %v593 = vmul.f32 %v575, %v587
    %v594 = vadd.f32 %v493, %v592
    %v595 = vadd.f32 %v494, %v593
    %v596 = vmul.f32 %v579, %v586
    %v597 = vmul.f32 %v581, %v587
    %v598 = vadd.f32 %v497, %v596
    %v599 = vadd.f32 %v498, %v597
    %v600 = vmul.f32 %v590, 0.33333334
    %v601 = vmul.f32 %v591, 0.33333334
    %vm602 = vcmask 122880
    %603 = vst.msk [vmem:[%s5] sm:$0x1] %vm602, %v600
    %604 = vst.msk [vmem:[%s5 + $0x4] sm:$0x1] %vm602, %v601
    %v605 = vmul.f32 %v594, 0.33333334
    %v606 = vmul.f32 %v595, 0.33333334
    %607 = vst.msk [vmem:[%s5 + $0x1] sm:$0x1] %vm602, %v605
    %608 = vst.msk [vmem:[%s5 + $0x5] sm:$0x1] %vm602, %v606
    %v609 = vmul.f32 %v598, 0.33333334
    %v610 = vmul.f32 %v599, 0.33333334
    %611 = vst.msk [vmem:[%s5 + $0x2] sm:$0x1] %vm602, %v609
    %612 = vst.msk [vmem:[%s5 + $0x6] sm:$0x1] %vm602, %v610
    // Predicated region
    $region26: #{tpu_custom_call.1} parent=1 // pred_check
      _
    $region27: #{tpu_custom_call.1} parent=1 // pred_check_branch
      %614 = sbr.rel (0) target = $region29
    $region28: #{tpu_custom_call.1} parent=1 // pred_region
      _
    $region29: #{tpu_custom_call.1} parent=1 // pred_fallthru
      _
    // Predicated region
    $region30: #{tpu_custom_call.1} parent=1 // pred_check
      _
    $region31: #{tpu_custom_call.1} parent=1 // pred_check_branch
      %616 = sbr.rel (0) target = $region33
    $region32: #{tpu_custom_call.1} parent=1 // pred_region
      _
    $region33: #{tpu_custom_call.1} parent=1 // pred_fallthru
      _
    %617 = vsyncpa [#allocation3], 1

</llo_original>
